<compile_context>
chip_gen: v7x
topology: tpu7x:2x2x1
jax: 0.10.0
libtpu: 0.0.40
codegen_flags: <defaults>
</compile_context>

<pallas_src>
import jax
import jax.numpy as jnp
from jax.experimental import pallas as pl
from jax.experimental.pallas import tpu as pltpu

NEG_SLOPE = 0.01  # torch.nn.LeakyReLU default negative_slope


def _round_up(x, m):
    return ((x + m - 1) // m) * m


def _sallow_emb_kernel(ids_ref, table_ref, out_ref):
    # ids_ref:   (1, 1, tile) int32, VMEM  -- lane-major tile of indices
    # table_ref: (Npad, Zpad) f32,   VMEM  -- full padded table, single resident buffer
    # out_ref:   (tile, Zpad) f32,   VMEM  -- lane-dense output tile
    tile = ids_ref.shape[-1]
    n_nodes_pad = table_ref.shape[0]

    idx = ids_ref[0, 0, :]  # (tile,) int32 on lanes
    # One-hot gather on the MXU: (tile, Npad) @ (Npad, Zpad) -> (tile, Zpad).
    iota = jax.lax.broadcasted_iota(jnp.int32, (tile, n_nodes_pad), 1)
    onehot = (idx[:, None] == iota).astype(table_ref.dtype)
    rows = jnp.dot(onehot, table_ref[...], preferred_element_type=jnp.float32)

    # LeakyReLU (negative_slope = 0.01) on the VPU; out-of-range / padded
    # indices produce zero rows (sliced off by the wrapper).
    out_ref[...] = jnp.where(rows >= 0, rows, NEG_SLOPE * rows).astype(out_ref.dtype)


def sallow_emb_forward(all_id, embedding_table, *, tile=256):
    """all_id: int array of arbitrary shape; embedding_table: [N, Z] float32.

    Returns leaky_relu(embedding_table[all_id]) with shape all_id.shape + (Z,).
    tile=256 fills a v6e/v7x MXU pass; use tile=128 when tuning for v5e.
    """
    n_nodes, z_dim = embedding_table.shape
    orig_shape = all_id.shape
    flat_ids = all_id.reshape(-1).astype(jnp.int32)
    n_idx = flat_ids.shape[0]

    # Row tile: large by default, clamped so tiny problems stay one small step.
    tile = max(8, min(tile, _round_up(n_idx, 8)))
    n_pad = _round_up(n_idx, tile)
    num_tiles = n_pad // tile

    # Pad so the MXU K dim and the output lanes are dense multiples of 128.
    # Padded rows/cols are zeros and are never selected / sliced off afterwards.
    n_nodes_pad = _round_up(n_nodes, 128)
    z_pad = _round_up(z_dim, 128)
    table = jnp.zeros((n_nodes_pad, z_pad), embedding_table.dtype)
    table = table.at[:n_nodes, :z_dim].set(embedding_table)

    # Lane-major index layout: (num_tiles, 1, tile); padded ids point at row 0.
    ids = jnp.zeros((n_pad,), jnp.int32).at[:n_idx].set(flat_ids)
    ids = ids.reshape(num_tiles, 1, tile)

    # Explicit VMEM budget: resident table (single buffer) + double-buffered
    # output tile + ids tiles + (tile, Npad) one-hot temporaries. Capped at
    # 64 MiB so the limit never exceeds a v7x TensorCore's physical VMEM.
    itemsize = 4
    needed = (
        n_nodes_pad * z_pad * itemsize          # resident table
        + 2 * tile * z_pad * itemsize           # double-buffered output tile
        + 2 * tile * itemsize                   # ids tiles
        + 2 * tile * n_nodes_pad * itemsize     # one-hot / compare temporaries
    )
    vmem_limit = int(min(max(2 * needed, 32 * 1024 * 1024), 64 * 1024 * 1024))

    out = pl.pallas_call(
        _sallow_emb_kernel,
        out_shape=jax.ShapeDtypeStruct((n_pad, z_pad), jnp.float32),
        grid_spec=pltpu.PrefetchScalarGridSpec(
            num_scalar_prefetch=0,
            grid=(num_tiles,),
            in_specs=[
                # Per-step lane-major tile of indices.
                pl.BlockSpec((1, 1, tile), lambda i: (i, 0, 0)),
                # Full padded table resident in VMEM once; block index never
                # changes, so it is not run through the double-buffered pipeline.
                pl.BlockSpec(memory_space=pltpu.MemorySpace.VMEM),
            ],
            out_specs=pl.BlockSpec((tile, z_pad), lambda i: (i, 0)),
        ),
        compiler_params=pltpu.CompilerParams(
            dimension_semantics=("parallel",),  # row tiles shard across TCs (megacore)
            vmem_limit_bytes=vmem_limit,
        ),
    )(ids, table)

    out = out[:n_idx, :z_dim]
    return out.reshape(*orig_shape, z_dim)


if __name__ == "__main__":
    key = jax.random.PRNGKey(0)
    k_emb, k_idx = jax.random.split(key)

    node_size = 64   # N
    z_dim = 32       # embedding dim
    B, S = 2, 8      # index tensor shape

    # torch.nn.Embedding initializes weights ~ N(0, 1).
    embedding_table = jax.random.normal(k_emb, (node_size, z_dim), dtype=jnp.float32)
    all_id = jax.random.randint(k_idx, (B, S), 0, node_size, dtype=jnp.int32)

    out = sallow_emb_forward(all_id, embedding_table)
    out = jax.block_until_ready(out)

    # Pure-JAX reference (embedding lookup + leaky relu).
    ref = embedding_table[all_id]
    ref = jnp.where(ref >= 0, ref, NEG_SLOPE * ref)
    assert out.shape == (B, S, z_dim)
    assert jnp.allclose(out, ref, atol=1e-5, rtol=1e-5)

    print("KERNEL_OK")
</pallas_src>

<mosaic_0001>
module attributes {stable_mosaic.version = 11 : i64} {
  func.func @_sallow_emb_kernel(%arg0: i32, %arg1: memref<1x1x16xi32, #tpu.memory_space<vmem>>, %arg2: memref<128x128xf32, #tpu.memory_space<vmem>>, %arg3: memref<16x128xf32, #tpu.memory_space<vmem>>) attributes {dimension_semantics = [#tpu.dimension_semantics<parallel>], iteration_bounds = array<i64: 1>, scalar_prefetch = 0 : i64, scratch_operands = 0 : i64, tpu.core_type = #tpu.core_type<tc>, window_params = [{transform_indices = @transform_0, window_bounds = array<i64: 1, 1, 16>}, {pipeline_mode = #tpu.pipeline_mode<synchronous>, transform_indices = @transform_1, window_bounds = array<i64: 128, 128>}, {transform_indices = @transform_2, window_bounds = array<i64: 16, 128>}]} {
    %c0 = arith.constant 0 : index
    %c0_0 = arith.constant 0 : index
    %c0_1 = arith.constant 0 : index
    %0 = vector.load %arg1[%c0, %c0_0, %c0_1] : memref<1x1x16xi32, #tpu.memory_space<vmem>>, vector<1x1x16xi32>
    %1 = vector.shape_cast %0 : vector<1x1x16xi32> to vector<16xi32>
    %2 = tpu.iota {dimensions = array<i32: 1>} : vector<16x128xi32>
    %3 = vector.shape_cast %1 : vector<16xi32> to vector<16x1xi32>
    %4 = vector.broadcast %3 : vector<16x1xi32> to vector<16x128xi32>
    %5 = arith.cmpi eq, %4, %2 : vector<16x128xi32>
    %6 = arith.extui %5 : vector<16x128xi1> to vector<16x128xi32>
    %7 = arith.sitofp %6 : vector<16x128xi32> to vector<16x128xf32>
    %c0_2 = arith.constant 0 : index
    %c0_3 = arith.constant 0 : index
    %8 = vector.load %arg2[%c0_2, %c0_3] : memref<128x128xf32, #tpu.memory_space<vmem>>, vector<128x128xf32>
    %cst = arith.constant dense<0.000000e+00> : vector<16x128xf32>
    %9 = tpu.matmul %7, %8, %cst {dimension_numbers = #tpu.dot_dimension_numbers<[1], [0], [0], [1], [0, 0, 1, 1], [], []>} : vector<16x128xf32>, vector<128x128xf32>, vector<16x128xf32> -> vector<16x128xf32>
    %cst_4 = arith.constant 0.000000e+00 : f32
    %10 = vector.broadcast %cst_4 : f32 to vector<16x128xf32>
    %11 = arith.cmpf oge, %9, %10 : vector<16x128xf32>
    %cst_5 = arith.constant 0.00999999977 : f32
    %12 = vector.broadcast %cst_5 : f32 to vector<16x128xf32>
    %13 = arith.mulf %12, %9 : vector<16x128xf32>
    %14 = arith.select %11, %9, %13 : vector<16x128xi1>, vector<16x128xf32>
    %c0_6 = arith.constant 0 : index
    %c0_7 = arith.constant 0 : index
    %15 = vector.load %arg3[%c0_6, %c0_7] : memref<16x128xf32, #tpu.memory_space<vmem>>, vector<16x128xf32>
    tpu.vector_store %arg3[%c0_6, %c0_7], %14 {strides = array<i32>} : memref<16x128xf32, #tpu.memory_space<vmem>>, vector<16x128xf32>,
    return
  }
  func.func @transform_0(%arg0: i32) -> (i32, i32, i32) {
    %c0_i32 = arith.constant 0 : i32
    %c0_i32_0 = arith.constant 0 : i32
    %c0_i32_1 = arith.constant 0 : i32
    return %arg0, %c0_i32, %c0_i32_0 : i32, i32, i32
  }
  func.func @transform_1(%arg0: i32) -> (i32, i32) {
    %c0_i32 = arith.constant 0 : i32
    %c0_i32_0 = arith.constant 0 : i32
    %c0_i32_1 = arith.constant 0 : i32
    return %c0_i32, %c0_i32_0 : i32, i32
  }
  func.func @transform_2(%arg0: i32) -> (i32, i32) {
    %c0_i32 = arith.constant 0 : i32
    %c0_i32_0 = arith.constant 0 : i32
    return %arg0, %c0_i32 : i32, i32
  }
}

</mosaic_0001>

<llo_original>
// kernel: tpu_custom_call.1
$region0: #{tpu_custom_call.1}
  #allocation0 [shape = 'u32[]', space=smem, size = 0x4, offset = 0x4, fixed_abs, tag = 'smem constant byte address 0x4 - core index']
  #allocation1 [shape = 'u32[144,128]{1,0:T(1,128)}', space=vmem, size = 0x12000, scoped, tag = 'internal scratch']
  %s0 = inlined_call_operand.hbm [shape: s32[1,1,16], index: 0, kind: input, shape index: {}]
  %s1 = inlined_call_operand.hbm [shape: f32[128,128], index: 1, kind: input, shape index: {}]
  %s2 = inlined_call_operand.hbm [shape: f32[16,128], index: 2, kind: output, shape index: {}]
  %s3 = sld [smem:[#allocation0]]
  $region26: #{tpu_custom_call.1} parent=0
    _
  %s5 = ssub.s32 1, %s3
  %s6 = scalar_select 0, %s5, %s3
  $region1: #{tpu_custom_call.1} parent=0
    #allocation2 [shape = 'u8[512]{0}', space=vmem, size = 0x400, scoped, tag = 'input window, operand 0, single buffered']
    #allocation3 [shape = 's32[1]{0}', space=sflag, size = 0x4, scoped, tag = 'scoped memory for tpu_custom_call.1']
    #allocation4 [shape = 's32[1]{0}', space=sflag, size = 0x4, scoped, tag = 'scoped memory for tpu_custom_call.1']
    #allocation5 [shape = 'u8[65536]{0}', space=vmem, size = 0x10000, scoped, tag = 'input window, operand 1, single buffered']
    #allocation6 [shape = 's32[1]{0}', space=sflag, size = 0x4, scoped, tag = 'scoped memory for tpu_custom_call.1']
    #allocation7 [shape = 'u8[8192]{0}', space=vmem, size = 0x2000, scoped, tag = 'output window, operand 0, single buffered']
    %7 = vsyncpa [#allocation3], 0
    %8 = vsyncpa [#allocation6], 0
    %9 = vsyncpa [#allocation4], 0
    // Predicated region
    $region2: #{tpu_custom_call.1} parent=1 // pred_check
      _
    $region3: #{tpu_custom_call.1} parent=1 // pred_check_branch
      %11 = sbr.rel (0) target = $region5
    $region4: #{tpu_custom_call.1} parent=1 // pred_region
      %s13 = ssub.s32 16, 16
      %14 = vsyncadd [#allocation3], %s13
      %s16 = sshll.u32 [#allocation2], 4
      %s17 = int_to_ptr.vmem [resolvable:$true] %s16
      %19 = dma.hbm_to_vmem [thread:$0]  %s0, 16, %s17, [#allocation3]
    $region5: #{tpu_custom_call.1} parent=1 // pred_fallthru
      _
    // Predicated region
    $region6: #{tpu_custom_call.1} parent=1 // pred_check
      _
    $region7: #{tpu_custom_call.1} parent=1 // pred_check_branch
      %21 = sbr.rel (0) target = $region9
    $region8: #{tpu_custom_call.1} parent=1 // pred_region
      %s23 = ssub.s32 2048, 2048
      %24 = vsyncadd [#allocation6], %s23
      %s25 = sshll.u32 [#allocation5], 4
      %s26 = int_to_ptr.vmem [resolvable:$true] %s25
      %31 = dma.hbm_to_vmem [thread:$0]  %s1, 2048, %s26, [#allocation6], 128, 128, 8
    $region9: #{tpu_custom_call.1} parent=1 // pred_fallthru
      _
    // Predicated region
    $region10: #{tpu_custom_call.1} parent=1 // pred_check
      _
    $region11: #{tpu_custom_call.1} parent=1 // pred_check_branch
      %33 = sbr.rel (0) target = $region13
    $region12: #{tpu_custom_call.1} parent=1 // pred_region
      %34 = dma.done [#allocation3], 16
    $region13: #{tpu_custom_call.1} parent=1 // pred_fallthru
      _
    // Predicated region
    $region14: #{tpu_custom_call.1} parent=1 // pred_check
      _
    $region15: #{tpu_custom_call.1} parent=1 // pred_check_branch
      %36 = sbr.rel (0) target = $region17
    $region16: #{tpu_custom_call.1} parent=1 // pred_region
      %37 = dma.done [#allocation6], 2048
    $region17: #{tpu_custom_call.1} parent=1 // pred_fallthru
      _
    %v38 = vld [vmem:[#allocation2] sm:$0x1]
    %v39 = vlaneseq
    %v40 = vand.u32 %v39, 127
    %v41 = vlaneseq
    %v42 = vshrl.u32 %v41, 7
    %v43 = vsub.s32 0, %v42
    %v44 = vrot.slane %v38, %v43
    %46 = vbcast.lane.b32.xlu0 %v44, 256
    %v47 = vpop.permute.xlu0 %46
    %s49 = sor.u32 256, 8
    %50 = vbcast.lane.b32.xlu0 %v44, %s49
    %v51 = vpop.permute.xlu0 %50
    %vm52 = vcmp.eq.s32.totalorder %v47, %v40
    %vm53 = vcmp.eq.s32.totalorder %v51, %v40
    %v54 = vsel %vm52, 1, 0
    %v55 = vsel %vm53, 1, 0
    %v56 = vcvt.s32.f32 %v54
    %v57 = vcvt.s32.f32 %v55
    %v58 = vld [vmem:[#allocation5] sm:$0xff]
    %v59 = vld [vmem:[#allocation5 + $0x8] sm:$0xff]
    %v60 = vld [vmem:[#allocation5 + $0x10] sm:$0xff]
    %v61 = vld [vmem:[#allocation5 + $0x18] sm:$0xff]
    %v62 = vld [vmem:[#allocation5 + $0x20] sm:$0xff]
    %v63 = vld [vmem:[#allocation5 + $0x28] sm:$0xff]
    %v64 = vld [vmem:[#allocation5 + $0x30] sm:$0xff]
    %v65 = vld [vmem:[#allocation5 + $0x38] sm:$0xff]
    %v66 = vld [vmem:[#allocation5 + $0x40] sm:$0xff]
    %v67 = vld [vmem:[#allocation5 + $0x48] sm:$0xff]
    %v68 = vld [vmem:[#allocation5 + $0x50] sm:$0xff]
    %v69 = vld [vmem:[#allocation5 + $0x58] sm:$0xff]
    %v70 = vld [vmem:[#allocation5 + $0x60] sm:$0xff]
    %v71 = vld [vmem:[#allocation5 + $0x68] sm:$0xff]
    %v72 = vld [vmem:[#allocation5 + $0x70] sm:$0xff]
    %v73 = vld [vmem:[#allocation5 + $0x78] sm:$0xff]
    %74 = vmatprep.subr.mxu0 0.0
    %75 = vmatpush1.msra.mxu0 %v58
    %76 = vmatprep.subr.mxu0 0.0
    %77 = vmatpush1.msra.mxu0 %v59
    %78 = vmatprep.subr.mxu0 0.0
    %79 = vmatpush1.msra.mxu0 %v60
    %80 = vmatprep.subr.mxu0 0.0
    %81 = vmatpush1.msra.mxu0 %v61
    %82 = vmatprep.subr.mxu0 0.0
    %83 = vmatpush1.msra.mxu0 %v62
    %84 = vmatprep.subr.mxu0 0.0
    %85 = vmatpush1.msra.mxu0 %v63
    %86 = vmatprep.subr.mxu0 0.0
    %87 = vmatpush1.msra.mxu0 %v64
    %88 = vmatprep.subr.mxu0 0.0
    %89 = vmatpush1.msra.mxu0 %v65
    %90 = vmatprep.subr.mxu0 0.0
    %91 = vmatpush1.msra.mxu0 %v66
    %92 = vmatprep.subr.mxu0 0.0
    %93 = vmatpush1.msra.mxu0 %v67
    %94 = vmatprep.subr.mxu0 0.0
    %95 = vmatpush1.msra.mxu0 %v68
    %96 = vmatprep.subr.mxu0 0.0
    %97 = vmatpush1.msra.mxu0 %v69
    %98 = vmatprep.subr.mxu0 0.0
    %99 = vmatpush1.msra.mxu0 %v70
    %100 = vmatprep.subr.mxu0 0.0
    %101 = vmatpush1.msra.mxu0 %v71
    %102 = vmatprep.subr.mxu0 0.0
    %103 = vmatpush1.msra.mxu0 %v72
    %104 = vmatprep.subr.mxu0 0.0
    %105 = vmatpush1.msra.mxu0 %v73
    %106 = vmatprep.subr.mxu0 0.0
    %107 = vmatpush1.msra.mxu0 0.0
    %108 = vmatprep.subr.mxu0 0.0
    %109 = vmatpush1.msra.mxu0 0.0
    %110 = vmatprep.subr.mxu0 0.0
    %111 = vmatpush1.msra.mxu0 0.0
    %112 = vmatprep.subr.mxu0 0.0
    %113 = vmatpush1.msra.mxu0 0.0
    %114 = vmatprep.subr.mxu0 0.0
    %115 = vmatpush1.msra.mxu0 0.0
    %116 = vmatprep.subr.mxu0 0.0
    %117 = vmatpush1.msra.mxu0 0.0
    %118 = vmatprep.subr.mxu0 0.0
    %119 = vmatpush1.msra.mxu0 0.0
    %120 = vmatprep.subr.mxu0 0.0
    %121 = vmatpush1.msra.mxu0 0.0
    %122 = vmatprep.subr.mxu0 0.0
    %123 = vmatpush1.msra.mxu0 0.0
    %124 = vmatprep.subr.mxu0 0.0
    %125 = vmatpush1.msra.mxu0 0.0
    %126 = vmatprep.subr.mxu0 0.0
    %127 = vmatpush1.msra.mxu0 0.0
    %128 = vmatprep.subr.mxu0 0.0
    %129 = vmatpush1.msra.mxu0 0.0
    %130 = vmatprep.subr.mxu0 0.0
    %131 = vmatpush1.msra.mxu0 0.0
    %132 = vmatprep.subr.mxu0 0.0
    %133 = vmatpush1.msra.mxu0 0.0
    %134 = vmatprep.subr.mxu0 0.0
    %135 = vmatpush1.msra.mxu0 0.0
    %136 = vmatprep.subr.mxu0 0.0
    %137 = vmatpush1.msra.mxu0 0.0
    %138 = vmatprep.mubr.f32.mxu0 0.0
    %139 = vmatmul.mubr.f32.gmra.mrb[0].mxu0 %v56
    %v140 = vpop.f32.mrb[0].mxu0
    %v141 = vadd.f32 0.0, %v140
    %v142 = vpop.f32.mrb[0].mxu0
    %143 = vmatprep.mubr.f32.mxu0 0.0
    %144 = vmatmul.mubr.f32.gmra.mrb[0].mxu0 %v57
    %v145 = vpop.f32.mrb[0].mxu0
    %v146 = vadd.f32 0.0, %v145
    %v147 = vpop.f32.mrb[0].mxu0
    %148 = vdwg.mxu0
    %vm149 = vcmp.ge.f32.partialorder %v141, 0.0
    %vm150 = vcmp.ge.f32.partialorder %v146, 0.0
    %v151 = vmul.f32 %v141, 0.01
    %v152 = vmul.f32 %v146, 0.01
    %v153 = vsel %vm149, %v141, %v151
    %v154 = vsel %vm150, %v146, %v152
    %155 = vst [vmem:[#allocation7] sm:$0xff] %v153
    %156 = vst [vmem:[#allocation7 + $0x8] sm:$0xff] %v154
    // Predicated region
    $region18: #{tpu_custom_call.1} parent=1 // pred_check
      _
    $region19: #{tpu_custom_call.1} parent=1 // pred_check_branch
      %158 = sbr.rel (0) target = $region21
    $region20: #{tpu_custom_call.1} parent=1 // pred_region
      %s160 = ssub.s32 256, 256
      %161 = vsyncadd [#allocation4], %s160
      %s162 = sshll.u32 [#allocation7], 4
      %s163 = int_to_ptr.vmem [resolvable:$true] %s162
      %168 = dma.vmem_to_hbm [thread:$0]  %s163, 256, %s2, [#allocation4], 128, 128, 8
    $region21: #{tpu_custom_call.1} parent=1 // pred_fallthru
      _
    // Predicated region
    $region22: #{tpu_custom_call.1} parent=1 // pred_check
      _
    $region23: #{tpu_custom_call.1} parent=1 // pred_check_branch
      %170 = sbr.rel (0) target = $region25
    $region24: #{tpu_custom_call.1} parent=1 // pred_region
      %171 = dma.done [#allocation4], 256
    $region25: #{tpu_custom_call.1} parent=1 // pred_fallthru
      _
    %172 = vsyncpa [#allocation3], 1
    %173 = vsyncpa [#allocation6], 1
    %174 = vsyncpa [#allocation4], 1

</llo_original>
